<compile_context>
chip_gen: v7x
topology: tpu7x:2x2x1
jax: 0.10.0
libtpu: 0.0.40
codegen_flags: <defaults>
</compile_context>

<pallas_src>
import jax
import jax.numpy as jnp
from jax.experimental import pallas as pl
from jax.experimental.pallas import tpu as pltpu


def _mfm_kernel(x_ref, o_ref):
    # x_ref block: (TB, 2, C_half, TS); o_ref block: (TB, C_half, TS)
    x = x_ref[...]
    o_ref[...] = jnp.maximum(x[:, 0], x[:, 1])


def _round_up(v, m):
    return ((v + m - 1) // m) * m


def _largest_divisor_leq(n, cap):
    cap = max(1, min(n, cap))
    for d in range(cap, 0, -1):
        if n % d == 0:
            return d
    return 1


def max_feature_map_2d(x, *, block_bytes_budget=2 * 1024 * 1024, max_lanes=2048):
    """MaxFeatureMap2D with max_dim=1.

    x: (B, C, *spatial) with C even. Returns (B, C//2, *spatial).
    """
    shape = x.shape
    assert len(shape) >= 2, "need at least (batch, channel)"
    B, C = int(shape[0]), int(shape[1])
    assert C % 2 == 0, "channel dim must be even"
    C_half = C // 2
    spatial = shape[2:]
    S = 1
    for d in spatial:
        S *= int(d)
    S = max(S, 1)
    itemsize = jnp.dtype(x.dtype).itemsize

    # --- Tile selection -----------------------------------------------------
    # Lane-dense spatial axis: pad flattened spatial up to a multiple of 128.
    S_pad = _round_up(S, 128)
    lane_groups = S_pad // 128

    # Spatial tile TS: a multiple of 128 that divides S_pad, bounded by the
    # VMEM budget (keeps double-buffering alive, incl. on v7x's 64 MiB VMEM).
    max_groups_by_budget = max(1, block_bytes_budget // (C * 128 * itemsize))
    max_groups = max(1, min(max_lanes // 128, max_groups_by_budget))
    ts_groups = _largest_divisor_leq(lane_groups, max_groups)
    TS = ts_groups * 128
    grid_s = S_pad // TS

    # Batch tile TB: largest divisor of B keeping the input block within budget
    # (amortizes per-grid-step overhead for small feature planes).
    max_tb = max(1, block_bytes_budget // (C * TS * itemsize))
    TB = _largest_divisor_leq(B, max_tb)
    grid_b = B // TB

    # --- Layout: channel-half split as a leading axis ------------------------
    x_flat = x.reshape(B, 2, C_half, S)
    if S_pad != S:
        x_flat = jnp.pad(x_flat, ((0, 0), (0, 0), (0, 0), (0, S_pad - S)))

    block_in_bytes = TB * C * TS * itemsize
    block_out_bytes = TB * C_half * TS * itemsize
    cp_kwargs = dict(dimension_semantics=("parallel", "parallel"))
    vmem_needed = 2 * (block_in_bytes + block_out_bytes) + (1 << 20)
    if vmem_needed > (32 << 20):  # only raise limit if we must (headroom on v7x)
        cp_kwargs["vmem_limit_bytes"] = int(min(vmem_needed, 64 << 20))

    out_flat = pl.pallas_call(
        _mfm_kernel,
        out_shape=jax.ShapeDtypeStruct((B, C_half, S_pad), x.dtype),
        grid_spec=pltpu.PrefetchScalarGridSpec(
            num_scalar_prefetch=0,
            grid=(grid_b, grid_s),
            in_specs=[
                pl.BlockSpec((TB, 2, C_half, TS), lambda b, s: (b, 0, 0, s)),
            ],
            out_specs=pl.BlockSpec((TB, C_half, TS), lambda b, s: (b, 0, s)),
        ),
        compiler_params=pltpu.CompilerParams(**cp_kwargs),
    )(x_flat)

    if S_pad != S:
        out_flat = out_flat[..., :S]
    return out_flat.reshape((B, C_half) + tuple(spatial))


if __name__ == "__main__":
    key = jax.random.PRNGKey(0)
    # Small NCHW shape consistent with the module: even channel count.
    B, C, H, W = 2, 4, 16, 16
    x = jax.random.normal(key, (B, C, H, W), dtype=jnp.float32)

    # Reference (same semantics as torch view+max over dim 1).
    ref = jnp.max(x.reshape(B, 2, C // 2, H, W), axis=1)

    # Default tiling (single fat block at this tiny shape).
    out = max_feature_map_2d(x)
    out = jax.block_until_ready(out)
    assert out.shape == (B, C // 2, H, W)
    assert jnp.allclose(out, ref), "mismatch vs reference (default tiling)"

    # Exercise the multi-step grid path (forced small spatial tiles).
    out2 = max_feature_map_2d(x, block_bytes_budget=4096, max_lanes=128)
    out2 = jax.block_until_ready(out2)
    assert out2.shape == (B, C // 2, H, W)
    assert jnp.allclose(out2, ref), "mismatch vs reference (tiled grid)"

    print("KERNEL_OK")
</pallas_src>

<mosaic_0001>
module attributes {stable_mosaic.version = 11 : i64} {
  func.func @_mfm_kernel(%arg0: i32, %arg1: i32, %arg2: memref<2x2x2x256xf32, #tpu.memory_space<vmem>>, %arg3: memref<2x2x256xf32, #tpu.memory_space<vmem>>) attributes {dimension_semantics = [#tpu.dimension_semantics<parallel>, #tpu.dimension_semantics<parallel>], iteration_bounds = array<i64: 1, 1>, scalar_prefetch = 0 : i64, scratch_operands = 0 : i64, tpu.core_type = #tpu.core_type<tc>, window_params = [{transform_indices = @transform_0, window_bounds = array<i64: 2, 2, 2, 256>}, {transform_indices = @transform_1, window_bounds = array<i64: 2, 2, 256>}]} {
    %c0 = arith.constant 0 : index
    %c0_0 = arith.constant 0 : index
    %c0_1 = arith.constant 0 : index
    %c0_2 = arith.constant 0 : index
    %0 = vector.load %arg2[%c0, %c0_0, %c0_1, %c0_2] : memref<2x2x2x256xf32, #tpu.memory_space<vmem>>, vector<2x2x2x256xf32>
    %1 = vector.extract_strided_slice %0 {offsets = [0, 0, 0, 0], sizes = [2, 1, 2, 256], strides = [1, 1, 1, 1]} : vector<2x2x2x256xf32> to vector<2x1x2x256xf32>
    %2 = vector.shape_cast %1 : vector<2x1x2x256xf32> to vector<2x2x256xf32>
    %3 = vector.extract_strided_slice %0 {offsets = [0, 1, 0, 0], sizes = [2, 1, 2, 256], strides = [1, 1, 1, 1]} : vector<2x2x2x256xf32> to vector<2x1x2x256xf32>
    %4 = vector.shape_cast %3 : vector<2x1x2x256xf32> to vector<2x2x256xf32>
    %5 = arith.maximumf %2, %4 : vector<2x2x256xf32>
    %c0_3 = arith.constant 0 : index
    %c0_4 = arith.constant 0 : index
    %c0_5 = arith.constant 0 : index
    %6 = vector.load %arg3[%c0_3, %c0_4, %c0_5] : memref<2x2x256xf32, #tpu.memory_space<vmem>>, vector<2x2x256xf32>
    tpu.vector_store %arg3[%c0_3, %c0_4, %c0_5], %5 {strides = array<i32>} : memref<2x2x256xf32, #tpu.memory_space<vmem>>, vector<2x2x256xf32>,
    return
  }
  func.func @transform_0(%arg0: i32, %arg1: i32) -> (i32, i32, i32, i32) {
    %c0_i32 = arith.constant 0 : i32
    %c0_i32_0 = arith.constant 0 : i32
    %c0_i32_1 = arith.constant 0 : i32
    return %arg0, %c0_i32, %c0_i32_0, %arg1 : i32, i32, i32, i32
  }
  func.func @transform_1(%arg0: i32, %arg1: i32) -> (i32, i32, i32) {
    %c0_i32 = arith.constant 0 : i32
    %c0_i32_0 = arith.constant 0 : i32
    return %arg0, %c0_i32, %arg1 : i32, i32, i32
  }
}

</mosaic_0001>

<llo_original>
// kernel: tpu_custom_call.1
$region0: #{tpu_custom_call.1}
  #allocation0 [shape = 'u32[]', space=smem, size = 0x4, offset = 0x4, fixed_abs, tag = 'smem constant byte address 0x4 - core index']
  #allocation1 [shape = 'u32[144,128]{1,0:T(1,128)}', space=vmem, size = 0x12000, scoped, tag = 'internal scratch']
  %s0 = inlined_call_operand.hbm [shape: f32[2,2,2,256], index: 0, kind: input, shape index: {}]
  %s1 = inlined_call_operand.hbm [shape: f32[2,2,256], index: 1, kind: output, shape index: {}]
  %s2 = sld [smem:[#allocation0]]
  $region18: #{tpu_custom_call.1} parent=0
    _
  %s4 = ssub.s32 1, %s2
  %s5 = scalar_select 0, %s4, %s2
  $region1: #{tpu_custom_call.1} parent=0
    #allocation2 [shape = 'u8[8192]{0}', space=vmem, size = 0x2000, scoped, tag = 'input window, operand 0, single buffered']
    #allocation3 [shape = 's32[1]{0}', space=sflag, size = 0x4, scoped, tag = 'scoped memory for tpu_custom_call.1']
    #allocation4 [shape = 's32[1]{0}', space=sflag, size = 0x4, scoped, tag = 'scoped memory for tpu_custom_call.1']
    #allocation5 [shape = 'u8[4096]{0}', space=vmem, size = 0x1000, scoped, tag = 'output window, operand 0, single buffered']
    %6 = vsyncpa [#allocation3], 0
    %7 = vsyncpa [#allocation4], 0
    // Predicated region
    $region2: #{tpu_custom_call.1} parent=1 // pred_check
      _
    $region3: #{tpu_custom_call.1} parent=1 // pred_check_branch
      %9 = sbr.rel (0) target = $region5
    $region4: #{tpu_custom_call.1} parent=1 // pred_region
      %s11 = ssub.s32 256, 256
      %12 = vsyncadd [#allocation3], %s11
      %s13 = sshll.u32 [#allocation2], 4
      %s14 = int_to_ptr.vmem [resolvable:$true] %s13
      %19 = dma.hbm_to_vmem [thread:$0]  %s0, 256, %s14, [#allocation3], 64, 64, 4
    $region5: #{tpu_custom_call.1} parent=1 // pred_fallthru
      _
    // Predicated region
    $region6: #{tpu_custom_call.1} parent=1 // pred_check
      _
    $region7: #{tpu_custom_call.1} parent=1 // pred_check_branch
      %21 = sbr.rel (0) target = $region9
    $region8: #{tpu_custom_call.1} parent=1 // pred_region
      %22 = dma.done [#allocation3], 256
    $region9: #{tpu_custom_call.1} parent=1 // pred_fallthru
      _
    %v23 = vld [vmem:[#allocation2] sm:$0xf]
    %v24 = vld [vmem:[#allocation2 + $0x4] sm:$0xf]
    %v25 = vld [vmem:[#allocation2 + $0x8] sm:$0xf]
    %v26 = vld [vmem:[#allocation2 + $0xc] sm:$0xf]
    %v27 = vmax.f32 %v23, %v24
    %v28 = vmax.f32 %v25, %v26
    %29 = vst [vmem:[#allocation5] sm:$0xf] %v27
    %30 = vst [vmem:[#allocation5 + $0x4] sm:$0xf] %v28
    // Predicated region
    $region10: #{tpu_custom_call.1} parent=1 // pred_check
      _
    $region11: #{tpu_custom_call.1} parent=1 // pred_check_branch
      %32 = sbr.rel (0) target = $region13
    $region12: #{tpu_custom_call.1} parent=1 // pred_region
      %s34 = ssub.s32 128, 128
      %35 = vsyncadd [#allocation4], %s34
      %s36 = sshll.u32 [#allocation5], 4
      %s37 = int_to_ptr.vmem [resolvable:$true] %s36
      %42 = dma.vmem_to_hbm [thread:$0]  %s37, 128, %s1, [#allocation4], 64, 64, 4
    $region13: #{tpu_custom_call.1} parent=1 // pred_fallthru
      _
    // Predicated region
    $region14: #{tpu_custom_call.1} parent=1 // pred_check
      _
    $region15: #{tpu_custom_call.1} parent=1 // pred_check_branch
      %44 = sbr.rel (0) target = $region17
    $region16: #{tpu_custom_call.1} parent=1 // pred_region
      %45 = dma.done [#allocation4], 128
    $region17: #{tpu_custom_call.1} parent=1 // pred_fallthru
      _
    %46 = vsyncpa [#allocation3], 1
    %47 = vsyncpa [#allocation4], 1

</llo_original>
